<compile_context>
chip_gen: v7x
topology: tpu7x:2x2x1
jax: 0.10.0
libtpu: 0.0.40
codegen_flags: <defaults>
</compile_context>

<pallas_src>
import functools

import jax
import jax.numpy as jnp
from jax.experimental import pallas as pl
from jax.experimental.pallas import tpu as pltpu

LN_EPS = 1e-5  # PyTorch nn.LayerNorm default


def _round_up(x, m):
    return (x + m - 1) // m * m


def _pick_tile(total, cap, granule):
    """Largest multiple of `granule` that divides `total` and is <= cap."""
    total = max(total, granule)
    cap = max(min(cap, total), granule)
    best = granule
    t = granule
    while t <= cap:
        if total % t == 0:
            best = t
        t += granule
    return best


@functools.lru_cache(maxsize=None)
def _vmem_budget_bytes():
    """~0.75x of the physical per-core VMEM (48 MiB v7x, ~96 MiB v5e/v6e)."""
    try:
        cap = int(pltpu.get_tpu_info().vmem_capacity_bytes)
    except Exception:
        cap = 64 * 2**20  # conservative fallback (v7x per-TC size)
    return (cap * 3) // 4


def _epilogue(z, gamma, beta, dx):
    """ReLU + LayerNorm over the first `dx` lanes of a 128-lane-padded block.

    Padded lanes of z / gamma / beta are zero, so the mean only needs the real
    divisor and the variance masks the padded lanes.
    """
    z = jnp.maximum(z, 0.0)
    lane = jax.lax.broadcasted_iota(jnp.int32, z.shape, dimension=1)
    real = lane < dx
    inv_dx = 1.0 / dx
    mean = jnp.sum(z, axis=-1, keepdims=True) * inv_dx       # padded lanes == 0
    centered = jnp.where(real, z - mean, 0.0)
    var = jnp.sum(centered * centered, axis=-1, keepdims=True) * inv_dx
    zhat = centered * jax.lax.rsqrt(var + LN_EPS)
    return zhat * gamma + beta
    # TODO(synk): training-mode dropout (pltpu.prng_seed + stateful_bernoulli);
    # identity in eval mode, as in the reference forward.


# ---------------------------------------------------------------------------
# Kernel 1: aggregation path (A.nnz > 0).  grid = (M row-blocks, K col-blocks).
# The accumulator holds z = A @ (h_X @ Wx) directly (associativity applied in
# the wrapper), so the inner loop is one MXU matmul + the A DMA, nothing else.
# ---------------------------------------------------------------------------
def _gnn_agg_kernel(a_ref, hxw_ref, bias_ref, gamma_ref, beta_ref,
                    out_ref, acc_ref, *, tk, dx, resident_hxw):
    k = pl.program_id(1)

    @pl.when(k == 0)
    def _():
        acc_ref[...] = jnp.zeros_like(acc_ref)

    if resident_hxw:
        start = k * tk
        if tk % 128 == 0:
            start = pl.multiple_of(start, 128)
        hxw = hxw_ref[pl.ds(start, tk), :]          # h_XW resident in VMEM
    else:
        hxw = hxw_ref[...]                          # streamed per k block

    # A arrives in its stored dtype (int8/bf16/f32); the upcast is free VPU
    # work under the DMA-bound loop.  f32 MXU accumulation.
    acc_ref[...] += jnp.dot(a_ref[...].astype(jnp.float32), hxw,
                            preferred_element_type=jnp.float32)

    # bias + ReLU + LayerNorm only once per row block, on the finished sum.
    @pl.when(k == pl.num_programs(1) - 1)
    def _():
        z = acc_ref[...] + bias_ref[...]            # bias_eff = h_t @ W_t + b
        out_ref[...] = _epilogue(z, gamma_ref[...], beta_ref[...],
                                 dx).astype(out_ref.dtype)


# ---------------------------------------------------------------------------
# Kernel 2: no-aggregation path (A.nnz == 0): h_aggr == h_X, A never touched.
# z = h_X @ Wx + bias_eff is already computed in the wrapper (tiny matmul), so
# this kernel is pure VPU/XLU epilogue work.
# ---------------------------------------------------------------------------
def _gnn_noagg_kernel(hxw_ref, bias_ref, gamma_ref, beta_ref, out_ref, *, dx):
    z = hxw_ref[...] + bias_ref[...]
    out_ref[...] = _epilogue(z, gamma_ref[...], beta_ref[...],
                             dx).astype(out_ref.dtype)


# ---------------------------------------------------------------------------
# Wrapper
# ---------------------------------------------------------------------------
@functools.partial(jax.jit, static_argnames=("nnz", "tm", "tk"))
def gnn_layer(A, h_X, h_t, W, b, gamma, beta, *, nnz, tm=None, tk=None):
    """GNNLayer forward.

    A:     [N, N]   dense adjacency in its STORED dtype (int8 recommended for
                    a 0/1 adjacency; bf16/f32 also accepted) — never copied or
                    re-cast in the wrapper, only padded when N is not a
                    multiple of the chosen tiles.
    h_X:   [N, Dx]  node features (kept in f32 end-to-end)
    h_t:   [1, Dt]  time embedding (broadcast over nodes)
    W:     [Dx+Dt, Dx]  Linear weight stored as (in, out)
    b, gamma, beta: [1, Dx]
    nnz:   Python int — number of nonzeros of A (host-side sparse metadata,
           mirrors `A.nnz` in the PyTorch module).
    tm/tk: optional static tile overrides (multiples of 128).
    """
    N, Dx = h_X.shape
    f32 = jnp.float32
    Dxp = max(_round_up(Dx, 128), 128)           # lane-dense feature dim

    # Fold the loop-invariant time-embedding term into one effective bias and
    # zero-pad all feature-dim params to 128 lanes.
    Wx = W[:Dx, :].astype(f32)                                   # [Dx, Dx]
    Wt = W[Dx:, :].astype(f32)                                   # [Dt, Dx]
    bias_eff = (h_t.astype(f32) @ Wt + b.astype(f32)).reshape(1, Dx)

    def _pad_cols(x):
        return jnp.pad(x, ((0, 0), (0, Dxp - Dx))) if Dxp != Dx else x

    bias_p = _pad_cols(bias_eff)
    gamma_p = _pad_cols(gamma.astype(f32).reshape(1, Dx))
    beta_p = _pad_cols(beta.astype(f32).reshape(1, Dx))

    # Associativity: (A @ h_X) @ Wx == A @ (h_X @ Wx).  Tiny f32 matmul here
    # removes the per-row-block epilogue matmul and the Wx operand stream.
    h_xw = h_X.astype(f32) @ Wx                                  # [N, Dx] f32
    out_dtype = h_X.dtype

    # ---------------- nnz == 0: aggregation skipped, A never read -----------
    if nnz == 0:
        tm0 = tm if tm is not None else min(1024, _round_up(max(N, 8), 8))
        Np0 = _round_up(N, tm0)
        hxw0 = h_xw
        if Np0 != N or Dxp != Dx:
            hxw0 = jnp.pad(h_xw, ((0, Np0 - N), (0, Dxp - Dx)))
        out = pl.pallas_call(
            functools.partial(_gnn_noagg_kernel, dx=Dx),
            out_shape=jax.ShapeDtypeStruct((Np0, Dxp), out_dtype),
            grid_spec=pltpu.PrefetchScalarGridSpec(
                num_scalar_prefetch=0,
                grid=(Np0 // tm0,),
                in_specs=[
                    pl.BlockSpec((tm0, Dxp), lambda i: (i, 0)),   # h_X @ Wx
                    pl.BlockSpec((1, Dxp), lambda i: (0, 0)),     # bias_eff
                    pl.BlockSpec((1, Dxp), lambda i: (0, 0)),     # gamma
                    pl.BlockSpec((1, Dxp), lambda i: (0, 0)),     # beta
                ],
                out_specs=pl.BlockSpec((tm0, Dxp), lambda i: (i, 0)),
            ),
            compiler_params=pltpu.CompilerParams(
                dimension_semantics=("parallel",)),
        )(hxw0, bias_p, gamma_p, beta_p)
        return out[:N, :Dx]

    # ---------------- nnz > 0: tiled A @ h_XW + fused epilogue --------------
    # Round N to a multiple of 128 first, then pick tiles that DIVIDE that
    # padded extent (minimal padded-A reads).  tm multiple of 128 also covers
    # the int8 (32,128) / bf16 (16,128) sublane-packing granularity.
    Np = _round_up(N, 128)
    if tk is None:
        tk = _pick_tile(Np, 2048, 128)
    if tm is None:
        tm_cap = 1024
        if Np >= 256:
            tm_cap = min(tm_cap, Np // 2)   # >= 2 row blocks => both TCs busy
        tm = _pick_tile(Np, tm_cap, 128)
    Np_m = _round_up(N, tm)
    Np_k = _round_up(N, tk)

    # A stays in its stored dtype; pad only if needed (no-op for N % tile == 0).
    a = A
    if (Np_m, Np_k) != (N, N):
        a = jnp.pad(A, ((0, Np_m - N), (0, Np_k - N)))
    hxw = h_xw
    if Np_k != N or Dxp != Dx:
        hxw = jnp.pad(h_xw, ((0, Np_k - N), (0, Dxp - Dx)))      # [Np_k, Dxp]

    # Keep h_XW fully VMEM-resident when it comfortably fits the budget;
    # otherwise stream a (tk, Dxp) block per reduction step.
    budget = _vmem_budget_bytes()
    hxw_bytes = Np_k * Dxp * 4
    resident_hxw = (2 * hxw_bytes) <= budget // 4

    a_itemsize = jnp.dtype(a.dtype).itemsize
    out_itemsize = jnp.dtype(out_dtype).itemsize
    est = (2 * tm * tk * a_itemsize                              # A, dbl-buffered
           + (2 * hxw_bytes if resident_hxw else 2 * tk * Dxp * 4)
           + 2 * tm * Dxp * out_itemsize                         # out, dbl-buffered
           + tm * Dxp * 4                                        # f32 accumulator
           + 2 * 3 * Dxp * 4)                                    # bias/gamma/beta
    vmem_limit = int(min(budget, max(32 * 2**20, 2 * est)))

    grid = (Np_m // tm, Np_k // tk)
    if resident_hxw:
        hxw_spec = pl.BlockSpec((Np_k, Dxp), lambda i, k: (0, 0))
    else:
        hxw_spec = pl.BlockSpec((tk, Dxp), lambda i, k: (k, 0))

    out = pl.pallas_call(
        functools.partial(_gnn_agg_kernel, tk=tk, dx=Dx,
                          resident_hxw=resident_hxw),
        out_shape=jax.ShapeDtypeStruct((Np_m, Dxp), out_dtype),
        grid_spec=pltpu.PrefetchScalarGridSpec(
            num_scalar_prefetch=0,
            grid=grid,
            in_specs=[
                pl.BlockSpec((tm, tk), lambda i, k: (i, k)),     # A (stored dtype)
                hxw_spec,                                        # h_X @ Wx (f32)
                pl.BlockSpec((1, Dxp), lambda i, k: (0, 0)),     # bias_eff
                pl.BlockSpec((1, Dxp), lambda i, k: (0, 0)),     # gamma
                pl.BlockSpec((1, Dxp), lambda i, k: (0, 0)),     # beta
            ],
            out_specs=pl.BlockSpec((tm, Dxp), lambda i, k: (i, 0)),
            scratch_shapes=[pltpu.VMEM((tm, Dxp), jnp.float32)],
        ),
        compiler_params=pltpu.CompilerParams(
            dimension_semantics=("parallel", "arbitrary"),
            vmem_limit_bytes=vmem_limit),
    )(a, hxw, bias_p, gamma_p, beta_p)
    return out[:N, :Dx]


def reference(A, h_X, h_t, W, b, gamma, beta, *, aggregate):
    """Pure-JAX f32 reference mirroring the PyTorch forward (eval mode)."""
    N = h_X.shape[0]
    h_aggr = (A.astype(jnp.float32) @ h_X) if aggregate else h_X
    h_cat = jnp.concatenate(
        [h_aggr, jnp.broadcast_to(h_t, (N, h_t.shape[1]))], axis=1)
    z = h_cat @ W + b
    z = jnp.maximum(z, 0.0)
    mean = jnp.mean(z, axis=-1, keepdims=True)
    var = jnp.mean((z - mean) ** 2, axis=-1, keepdims=True)
    return (z - mean) * jax.lax.rsqrt(var + LN_EPS) * gamma + beta


if __name__ == "__main__":
    # Shapes matching the module: num_nodes=16, hidden_X=32, hidden_t=16.
    N, Dx, Dt = 16, 32, 16
    key = jax.random.PRNGKey(0)
    k_a, k_x, k_t, k_w, k_b, k_g, k_be = jax.random.split(key, 7)

    mask = jax.random.uniform(k_a, (N, N)) > 0.7
    A = mask.astype(jnp.int8)               # adjacency stored as int8 in HBM
    nnz = int(jnp.sum(mask))                # host-side sparse metadata (A.nnz)
    h_X = jax.random.normal(k_x, (N, Dx), dtype=jnp.float32)
    h_t = jax.random.normal(k_t, (1, Dt), dtype=jnp.float32)

    W = jax.random.normal(k_w, (Dx + Dt, Dx), dtype=jnp.float32) / jnp.sqrt(Dx + Dt)
    b = jax.random.normal(k_b, (1, Dx), dtype=jnp.float32) * 0.01
    gamma = 1.0 + 0.1 * jax.random.normal(k_g, (1, Dx), dtype=jnp.float32)
    beta = 0.01 * jax.random.normal(k_be, (1, Dx), dtype=jnp.float32)

    # --- aggregation path (module's own shape) ---
    out = gnn_layer(A, h_X, h_t, W, b, gamma, beta, nnz=nnz)
    jax.block_until_ready(out)
    assert out.shape == (N, Dx)
    ref = reference(A, h_X, h_t, W, b, gamma, beta, aggregate=True)
    assert jnp.allclose(out, ref, atol=1e-3, rtol=1e-3), "mismatch (agg) vs reference"

    # --- nnz == 0 path: aggregation skipped, A never read ---
    out0 = gnn_layer(jnp.zeros((N, N), jnp.int8), h_X, h_t,
                     W, b, gamma, beta, nnz=0)
    jax.block_until_ready(out0)
    ref0 = reference(A, h_X, h_t, W, b, gamma, beta, aggregate=False)
    assert jnp.allclose(out0, ref0, atol=1e-3, rtol=1e-3), "mismatch (nnz==0) vs reference"

    # --- N not a multiple of 128: exercises the padded-A path, auto tiles ---
    N2 = 200
    k2a, k2x = jax.random.split(jax.random.PRNGKey(1), 2)
    mask2 = jax.random.uniform(k2a, (N2, N2)) > 0.9
    A2 = mask2.astype(jnp.int8)
    h_X2 = jax.random.normal(k2x, (N2, Dx), dtype=jnp.float32)
    out2 = gnn_layer(A2, h_X2, h_t, W, b, gamma, beta, nnz=int(jnp.sum(mask2)))
    jax.block_until_ready(out2)
    ref2 = reference(A2, h_X2, h_t, W, b, gamma, beta, aggregate=True)
    assert jnp.allclose(out2, ref2, atol=1e-3, rtol=1e-3), "mismatch (padded) vs reference"

    # --- explicit (2, 2) grid: exercises the tiled reduction / accumulator ---
    N3 = 256
    k3a, k3x = jax.random.split(jax.random.PRNGKey(2), 2)
    mask3 = jax.random.uniform(k3a, (N3, N3)) > 0.9
    A3 = mask3.astype(jnp.int8)
    h_X3 = jax.random.normal(k3x, (N3, Dx), dtype=jnp.float32)
    out3 = gnn_layer(A3, h_X3, h_t, W, b, gamma, beta,
                     nnz=int(jnp.sum(mask3)), tm=128, tk=128)
    jax.block_until_ready(out3)
    ref3 = reference(A3, h_X3, h_t, W, b, gamma, beta, aggregate=True)
    assert jnp.allclose(out3, ref3, atol=1e-3, rtol=1e-3), "mismatch (tiled) vs reference"

    print("KERNEL_OK")
</pallas_src>

<mosaic_0001>
module attributes {stable_mosaic.version = 11 : i64} {
  func.func @_gnn_agg_kernel(%arg0: i32, %arg1: i32, %arg2: memref<128x128xi8, #tpu.memory_space<vmem>>, %arg3: memref<128x128xf32, #tpu.memory_space<vmem>>, %arg4: memref<1x128xf32, #tpu.memory_space<vmem>>, %arg5: memref<1x128xf32, #tpu.memory_space<vmem>>, %arg6: memref<1x128xf32, #tpu.memory_space<vmem>>, %arg7: memref<128x128xf32, #tpu.memory_space<vmem>>, %arg8: memref<128x128xf32, #tpu.memory_space<vmem>>) attributes {dimension_semantics = [#tpu.dimension_semantics<parallel>, #tpu.dimension_semantics<arbitrary>], iteration_bounds = array<i64: 1, 1>, scalar_prefetch = 0 : i64, scratch_operands = 1 : i64, tpu.core_type = #tpu.core_type<tc>, window_params = [{transform_indices = @transform_0, window_bounds = array<i64: 128, 128>}, {pipeline_mode = #tpu.pipeline_mode<synchronous>, transform_indices = @transform_1, window_bounds = array<i64: 128, 128>}, {pipeline_mode = #tpu.pipeline_mode<synchronous>, transform_indices = @transform_2, window_bounds = array<i64: 1, 128>}, {pipeline_mode = #tpu.pipeline_mode<synchronous>, transform_indices = @transform_3, window_bounds = array<i64: 1, 128>}, {pipeline_mode = #tpu.pipeline_mode<synchronous>, transform_indices = @transform_4, window_bounds = array<i64: 1, 128>}, {transform_indices = @transform_5, window_bounds = array<i64: 128, 128>}]} {
    %c0_i32 = arith.constant 0 : i32
    %0 = arith.cmpi eq, %arg1, %c0_i32 : i32
    %1 = arith.extui %0 : i1 to i32
    %c0_i32_0 = arith.constant 0 : i32
    %2 = arith.cmpi ne, %1, %c0_i32_0 : i32
    scf.if %2 {
      %cst_9 = arith.constant 0.000000e+00 : f32
      %16 = vector.broadcast %cst_9 : f32 to vector<128x128xf32>
      %c0_10 = arith.constant 0 : index
      %c0_11 = arith.constant 0 : index
      %17 = vector.load %arg8[%c0_10, %c0_11] : memref<128x128xf32, #tpu.memory_space<vmem>>, vector<128x128xf32>
      tpu.vector_store %arg8[%c0_10, %c0_11], %16 {strides = array<i32>} : memref<128x128xf32, #tpu.memory_space<vmem>>, vector<128x128xf32>,
    } else {
    }
    %c128_i32 = arith.constant 128 : i32
    %3 = arith.muli %arg1, %c128_i32 : i32
    %4 = tpu.assume_multiple %3, 128 : i32
    %5 = arith.index_cast %4 : i32 to index
    %c0 = arith.constant 0 : index
    %6 = vector.load %arg3[%5, %c0] : memref<128x128xf32, #tpu.memory_space<vmem>>, vector<128x128xf32>
    %c0_1 = arith.constant 0 : index
    %c0_2 = arith.constant 0 : index
    %7 = vector.load %arg8[%c0_1, %c0_2] : memref<128x128xf32, #tpu.memory_space<vmem>>, vector<128x128xf32>
    %c0_3 = arith.constant 0 : index
    %c0_4 = arith.constant 0 : index
    %8 = vector.load %arg2[%c0_3, %c0_4] : memref<128x128xi8, #tpu.memory_space<vmem>>, vector<128x128xi8>
    %9 = arith.sitofp %8 : vector<128x128xi8> to vector<128x128xf32>
    %cst = arith.constant dense<0.000000e+00> : vector<128x128xf32>
    %10 = tpu.matmul %9, %6, %cst {dimension_numbers = #tpu.dot_dimension_numbers<[1], [0], [0], [1], [0, 0, 1, 1], [], []>} : vector<128x128xf32>, vector<128x128xf32>, vector<128x128xf32> -> vector<128x128xf32>
    %11 = arith.addf %7, %10 : vector<128x128xf32>
    %c0_5 = arith.constant 0 : index
    %c0_6 = arith.constant 0 : index
    %12 = vector.load %arg8[%c0_5, %c0_6] : memref<128x128xf32, #tpu.memory_space<vmem>>, vector<128x128xf32>
    tpu.vector_store %arg8[%c0_5, %c0_6], %11 {strides = array<i32>} : memref<128x128xf32, #tpu.memory_space<vmem>>, vector<128x128xf32>,
    %c0_i32_7 = arith.constant 0 : i32
    %13 = arith.cmpi eq, %arg1, %c0_i32_7 : i32
    %14 = arith.extui %13 : i1 to i32
    %c0_i32_8 = arith.constant 0 : i32
    %15 = arith.cmpi ne, %14, %c0_i32_8 : i32
    scf.if %15 {
      %c0_9 = arith.constant 0 : index
      %c0_10 = arith.constant 0 : index
      %16 = vector.load %arg8[%c0_9, %c0_10] : memref<128x128xf32, #tpu.memory_space<vmem>>, vector<128x128xf32>
      %c0_11 = arith.constant 0 : index
      %c0_12 = arith.constant 0 : index
      %17 = vector.load %arg4[%c0_11, %c0_12] : memref<1x128xf32, #tpu.memory_space<vmem>>, vector<1x128xf32>
      %18 = vector.broadcast %17 : vector<1x128xf32> to vector<128x128xf32>
      %19 = arith.addf %16, %18 : vector<128x128xf32>
      %c0_13 = arith.constant 0 : index
      %c0_14 = arith.constant 0 : index
      %20 = vector.load %arg5[%c0_13, %c0_14] : memref<1x128xf32, #tpu.memory_space<vmem>>, vector<1x128xf32>
      %c0_15 = arith.constant 0 : index
      %c0_16 = arith.constant 0 : index
      %21 = vector.load %arg6[%c0_15, %c0_16] : memref<1x128xf32, #tpu.memory_space<vmem>>, vector<1x128xf32>
      %cst_17 = arith.constant 0.000000e+00 : f32
      %22 = vector.broadcast %cst_17 : f32 to vector<128x128xf32>
      %23 = arith.maximumf %19, %22 : vector<128x128xf32>
      %24 = tpu.iota {dimensions = array<i32: 1>} : vector<128x128xi32>
      %c32_i32 = arith.constant 32 : i32
      %25 = vector.broadcast %c32_i32 : i32 to vector<128x128xi32>
      %26 = arith.cmpi slt, %24, %25 : vector<128x128xi32>
      %cst_18 = arith.constant dense<0.000000e+00> : vector<128xf32>
      %27 = vector.multi_reduction <add>, %23, %cst_18 [1] : vector<128x128xf32> to vector<128xf32>
      %28 = vector.shape_cast %27 : vector<128xf32> to vector<128x1xf32>
      %cst_19 = arith.constant 3.125000e-02 : f32
      %29 = vector.broadcast %cst_19 : f32 to vector<128x1xf32>
      %30 = arith.mulf %28, %29 : vector<128x1xf32>
      %31 = vector.broadcast %30 : vector<128x1xf32> to vector<128x128xf32>
      %32 = arith.subf %23, %31 : vector<128x128xf32>
      %cst_20 = arith.constant 0.000000e+00 : f32
      %33 = vector.broadcast %cst_20 : f32 to vector<128x128xf32>
      %34 = arith.select %26, %32, %33 : vector<128x128xi1>, vector<128x128xf32>
      %35 = arith.mulf %34, %34 : vector<128x128xf32>
      %cst_21 = arith.constant dense<0.000000e+00> : vector<128xf32>
      %36 = vector.multi_reduction <add>, %35, %cst_21 [1] : vector<128x128xf32> to vector<128xf32>
      %37 = vector.shape_cast %36 : vector<128xf32> to vector<128x1xf32>
      %cst_22 = arith.constant 3.125000e-02 : f32
      %38 = vector.broadcast %cst_22 : f32 to vector<128x1xf32>
      %39 = arith.mulf %37, %38 : vector<128x1xf32>
      %cst_23 = arith.constant 9.99999974E-6 : f32
      %40 = vector.broadcast %cst_23 : f32 to vector<128x1xf32>
      %41 = arith.addf %39, %40 : vector<128x1xf32>
      %42 = math.rsqrt %41 : vector<128x1xf32>
      %43 = vector.broadcast %42 : vector<128x1xf32> to vector<128x128xf32>
      %44 = arith.mulf %34, %43 : vector<128x128xf32>
      %45 = vector.broadcast %20 : vector<1x128xf32> to vector<128x128xf32>
      %46 = arith.mulf %44, %45 : vector<128x128xf32>
      %47 = vector.broadcast %21 : vector<1x128xf32> to vector<128x128xf32>
      %48 = arith.addf %46, %47 : vector<128x128xf32>
      %c0_24 = arith.constant 0 : index
      %c0_25 = arith.constant 0 : index
      %49 = vector.load %arg7[%c0_24, %c0_25] : memref<128x128xf32, #tpu.memory_space<vmem>>, vector<128x128xf32>
      tpu.vector_store %arg7[%c0_24, %c0_25], %48 {strides = array<i32>} : memref<128x128xf32, #tpu.memory_space<vmem>>, vector<128x128xf32>,
    } else {
    }
    return
  }
  func.func @transform_0(%arg0: i32, %arg1: i32) -> (i32, i32) {
    %c0_i32 = arith.constant 0 : i32
    return %arg0, %arg1 : i32, i32
  }
  func.func @transform_1(%arg0: i32, %arg1: i32) -> (i32, i32) {
    %c0_i32 = arith.constant 0 : i32
    %c0_i32_0 = arith.constant 0 : i32
    %c0_i32_1 = arith.constant 0 : i32
    return %c0_i32, %c0_i32_0 : i32, i32
  }
  func.func @transform_2(%arg0: i32, %arg1: i32) -> (i32, i32) {
    %c0_i32 = arith.constant 0 : i32
    %c0_i32_0 = arith.constant 0 : i32
    %c0_i32_1 = arith.constant 0 : i32
    return %c0_i32, %c0_i32_0 : i32, i32
  }
  func.func @transform_3(%arg0: i32, %arg1: i32) -> (i32, i32) {
    %c0_i32 = arith.constant 0 : i32
    %c0_i32_0 = arith.constant 0 : i32
    %c0_i32_1 = arith.constant 0 : i32
    return %c0_i32, %c0_i32_0 : i32, i32
  }
  func.func @transform_4(%arg0: i32, %arg1: i32) -> (i32, i32) {
    %c0_i32 = arith.constant 0 : i32
    %c0_i32_0 = arith.constant 0 : i32
    %c0_i32_1 = arith.constant 0 : i32
    return %c0_i32, %c0_i32_0 : i32, i32
  }
  func.func @transform_5(%arg0: i32, %arg1: i32) -> (i32, i32) {
    %c0_i32 = arith.constant 0 : i32
    %c0_i32_0 = arith.constant 0 : i32
    return %arg0, %c0_i32 : i32, i32
  }
}

</mosaic_0001>

<llo_original>
// kernel: gnn_layer.1
$region0: #{gnn_layer.1}
  #allocation0 [shape = 'u32[]', space=smem, size = 0x4, offset = 0x4, fixed_abs, tag = 'smem constant byte address 0x4 - core index']
  #allocation1 [shape = 'u32[144,128]{1,0:T(1,128)}', space=vmem, size = 0x12000, scoped, tag = 'internal scratch']
  #allocation2 [shape = 'f32[128,128]{1,0:T(8,128)}', space=vmem, size = 0x10000, scoped, tag = 'scratch operand']
  %s0 = inlined_call_operand.vmem [shape: s8[128,128], index: 0, kind: input, shape index: {}]
  %s1 = inlined_call_operand.vmem [shape: f32[128,128], index: 1, kind: input, shape index: {}]
  %s2 = inlined_call_operand.vmem [shape: f32[1,128], index: 2, kind: input, shape index: {}]
  %s3 = inlined_call_operand.vmem [shape: f32[1,128], index: 3, kind: input, shape index: {}]
  %s4 = inlined_call_operand.vmem [shape: f32[1,128], index: 4, kind: input, shape index: {}]
  %s5 = inlined_call_operand.vmem [shape: f32[128,128], index: 5, kind: output, shape index: {}]
  %s6 = sld [smem:[#allocation0]]
  $region38: #{gnn_layer.1} parent=0
    _
  %s8 = ssub.s32 1, %s6
  %s9 = scalar_select 0, %s8, %s6
  // Predicated region
  $region2: #{gnn_layer.1} parent=0 // pred_check
    _
  $region3: #{gnn_layer.1} parent=0 // pred_check_branch
    %11 = sbr.rel (0) target = $region5
  $region4: #{gnn_layer.1} parent=0 // pred_region
    _
  $region5: #{gnn_layer.1} parent=0 // pred_fallthru
    _
  // Predicated region
  $region6: #{gnn_layer.1} parent=0 // pred_check
    _
  $region7: #{gnn_layer.1} parent=0 // pred_check_branch
    %13 = sbr.rel (0) target = $region9
  $region8: #{gnn_layer.1} parent=0 // pred_region
    _
  $region9: #{gnn_layer.1} parent=0 // pred_fallthru
    _
  // Predicated region
  $region10: #{gnn_layer.1} parent=0 // pred_check
    _
  $region11: #{gnn_layer.1} parent=0 // pred_check_branch
    %15 = sbr.rel (0) target = $region13
  $region12: #{gnn_layer.1} parent=0 // pred_region
    _
  $region13: #{gnn_layer.1} parent=0 // pred_fallthru
    _
  // Predicated region
  $region14: #{gnn_layer.1} parent=0 // pred_check
    _
  $region15: #{gnn_layer.1} parent=0 // pred_check_branch
    %17 = sbr.rel (0) target = $region17
  $region16: #{gnn_layer.1} parent=0 // pred_region
    _
  $region17: #{gnn_layer.1} parent=0 // pred_fallthru
    _
  // Predicated region
  $region18: #{gnn_layer.1} parent=0 // pred_check
    _
  $region19: #{gnn_layer.1} parent=0 // pred_check_branch
    %19 = sbr.rel (0) target = $region21
  $region20: #{gnn_layer.1} parent=0 // pred_region
    _
  $region21: #{gnn_layer.1} parent=0 // pred_fallthru
    _
  %p20 = scmp.eq.s32.totalorder 0, 0
  // Predicated region
  $region22: #{gnn_layer.1} parent=0 // pred_check
    %p21 = pneg %p20
  $region23: #{gnn_layer.1} parent=0 // pred_check_branch
    %23 = sbr.rel (%p21) target = $region25
  $region24: #{gnn_layer.1} parent=0 // pred_region
    %24 = vst [vmem:[#allocation2] sm:$0xff] 0.0
    %25 = vst [vmem:[#allocation2 + $0x8] sm:$0xff] 0.0
    %26 = vst [vmem:[#allocation2 + $0x10] sm:$0xff] 0.0
    %27 = vst [vmem:[#allocation2 + $0x18] sm:$0xff] 0.0
    %28 = vst [vmem:[#allocation2 + $0x20] sm:$0xff] 0.0
    %29 = vst [vmem:[#allocation2 + $0x28] sm:$0xff] 0.0
    %30 = vst [vmem:[#allocation2 + $0x30] sm:$0xff] 0.0
    %31 = vst [vmem:[#allocation2 + $0x38] sm:$0xff] 0.0
    %32 = vst [vmem:[#allocation2 + $0x40] sm:$0xff] 0.0
    %33 = vst [vmem:[#allocation2 + $0x48] sm:$0xff] 0.0
    %34 = vst [vmem:[#allocation2 + $0x50] sm:$0xff] 0.0
    %35 = vst [vmem:[#allocation2 + $0x58] sm:$0xff] 0.0
    %36 = vst [vmem:[#allocation2 + $0x60] sm:$0xff] 0.0
    %37 = vst [vmem:[#allocation2 + $0x68] sm:$0xff] 0.0
    %38 = vst [vmem:[#allocation2 + $0x70] sm:$0xff] 0.0
    %39 = vst [vmem:[#allocation2 + $0x78] sm:$0xff] 0.0
  $region25: #{gnn_layer.1} parent=0 // pred_fallthru
    _
  %s40 = smul.u32 0, 128
  %s41 = scalar_lea.vmem %s1, %s40
  %v42 = vld [vmem:[%s41] sm:$0xff]
  %v43 = vld [vmem:[%s41 + $0x8] sm:$0xff]
  %v44 = vld [vmem:[%s41 + $0x10] sm:$0xff]
  %v45 = vld [vmem:[%s41 + $0x18] sm:$0xff]
  %v46 = vld [vmem:[%s41 + $0x20] sm:$0xff]
  %v47 = vld [vmem:[%s41 + $0x28] sm:$0xff]
  %v48 = vld [vmem:[%s41 + $0x30] sm:$0xff]
  %v49 = vld [vmem:[%s41 + $0x38] sm:$0xff]
  %v50 = vld [vmem:[%s41 + $0x40] sm:$0xff]
  %v51 = vld [vmem:[%s41 + $0x48] sm:$0xff]
  %v52 = vld [vmem:[%s41 + $0x50] sm:$0xff]
  %v53 = vld [vmem:[%s41 + $0x58] sm:$0xff]
  %v54 = vld [vmem:[%s41 + $0x60] sm:$0xff]
  %v55 = vld [vmem:[%s41 + $0x68] sm:$0xff]
  %v56 = vld [vmem:[%s41 + $0x70] sm:$0xff]
  %v57 = vld [vmem:[%s41 + $0x78] sm:$0xff]
  %v58 = vld [vmem:[#allocation2] sm:$0xff]
  %v59 = vld [vmem:[#allocation2 + $0x8] sm:$0xff]
  %v60 = vld [vmem:[#allocation2 + $0x10] sm:$0xff]
  %v61 = vld [vmem:[#allocation2 + $0x18] sm:$0xff]
  %v62 = vld [vmem:[#allocation2 + $0x20] sm:$0xff]
  %v63 = vld [vmem:[#allocation2 + $0x28] sm:$0xff]
  %v64 = vld [vmem:[#allocation2 + $0x30] sm:$0xff]
  %v65 = vld [vmem:[#allocation2 + $0x38] sm:$0xff]
  %v66 = vld [vmem:[#allocation2 + $0x40] sm:$0xff]
  %v67 = vld [vmem:[#allocation2 + $0x48] sm:$0xff]
  %v68 = vld [vmem:[#allocation2 + $0x50] sm:$0xff]
  %v69 = vld [vmem:[#allocation2 + $0x58] sm:$0xff]
  %v70 = vld [vmem:[#allocation2 + $0x60] sm:$0xff]
  %v71 = vld [vmem:[#allocation2 + $0x68] sm:$0xff]
  %v72 = vld [vmem:[#allocation2 + $0x70] sm:$0xff]
  %v73 = vld [vmem:[#allocation2 + $0x78] sm:$0xff]
  %v74 = vld [vmem:[%s0] sm:$0xff]
  %v75 = vld [vmem:[%s0 + $0x8] sm:$0xff]
  %v76 = vld [vmem:[%s0 + $0x10] sm:$0xff]
  %v77 = vld [vmem:[%s0 + $0x18] sm:$0xff]
  %v78 = vunpack.c.0.s8 %v74
  %v79 = vunpack.c.1.s8 %v74
  %v80 = vunpack.c.2.s8 %v74
  %v81 = vunpack.c.3.s8 %v74
  %v82 = vunpack.c.0.s8 %v75
  %v83 = vunpack.c.1.s8 %v75
  %v84 = vunpack.c.2.s8 %v75
  %v85 = vunpack.c.3.s8 %v75
  %v86 = vunpack.c.0.s8 %v76
  %v87 = vunpack.c.1.s8 %v76
  %v88 = vunpack.c.2.s8 %v76
  %v89 = vunpack.c.3.s8 %v76
  %v90 = vunpack.c.0.s8 %v77
  %v91 = vunpack.c.1.s8 %v77
  %v92 = vunpack.c.2.s8 %v77
  %v93 = vunpack.c.3.s8 %v77
  %v94 = vcvt.s32.f32 %v78
  %v95 = vcvt.s32.f32 %v79
  %v96 = vcvt.s32.f32 %v80
  %v97 = vcvt.s32.f32 %v81
  %v98 = vcvt.s32.f32 %v82
  %v99 = vcvt.s32.f32 %v83
  %v100 = vcvt.s32.f32 %v84
  %v101 = vcvt.s32.f32 %v85
  %v102 = vcvt.s32.f32 %v86
  %v103 = vcvt.s32.f32 %v87
  %v104 = vcvt.s32.f32 %v88
  %v105 = vcvt.s32.f32 %v89
  %v106 = vcvt.s32.f32 %v90
  %v107 = vcvt.s32.f32 %v91
  %v108 = vcvt.s32.f32 %v92
  %v109 = vcvt.s32.f32 %v93
  %110 = vmatprep.subr.mxu0 0.0
  %111 = vmatpush1.msra.mxu0 %v42
  %112 = vmatprep.subr.mxu0 0.0
  %113 = vmatpush1.msra.mxu0 %v43
  %114 = vmatprep.subr.mxu0 0.0
  %115 = vmatpush1.msra.mxu0 %v44
  %116 = vmatprep.subr.mxu0 0.0
  %117 = vmatpush1.msra.mxu0 %v45
  %118 = vmatprep.subr.mxu0 0.0
  %119 = vmatpush1.msra.mxu0 %v46
  %120 = vmatprep.subr.mxu0 0.0
  %121 = vmatpush1.msra.mxu0 %v47
  %122 = vmatprep.subr.mxu0 0.0
  %123 = vmatpush1.msra.mxu0 %v48
  %124 = vmatprep.subr.mxu0 0.0
  %125 = vmatpush1.msra.mxu0 %v49
  %126 = vmatprep.subr.mxu0 0.0
  %127 = vmatpush1.msra.mxu0 %v50
  %128 = vmatprep.subr.mxu0 0.0
  %129 = vmatpush1.msra.mxu0 %v51
  %130 = vmatprep.subr.mxu0 0.0
  %131 = vmatpush1.msra.mxu0 %v52
  %132 = vmatprep.subr.mxu0 0.0
  %133 = vmatpush1.msra.mxu0 %v53
  %134 = vmatprep.subr.mxu0 0.0
  %135 = vmatpush1.msra.mxu0 %v54
  %136 = vmatprep.subr.mxu0 0.0
  %137 = vmatpush1.msra.mxu0 %v55
  %138 = vmatprep.subr.mxu0 0.0
  %139 = vmatpush1.msra.mxu0 %v56
  %140 = vmatprep.subr.mxu0 0.0
  %141 = vmatpush1.msra.mxu0 %v57
  %142 = vmatprep.subr.mxu0 0.0
  %143 = vmatpush1.msra.mxu0 0.0
  %144 = vmatprep.subr.mxu0 0.0
  %145 = vmatpush1.msra.mxu0 0.0
  %146 = vmatprep.subr.mxu0 0.0
  %147 = vmatpush1.msra.mxu0 0.0
  %148 = vmatprep.subr.mxu0 0.0
  %149 = vmatpush1.msra.mxu0 0.0
  %150 = vmatprep.subr.mxu0 0.0
  %151 = vmatpush1.msra.mxu0 0.0
  %152 = vmatprep.subr.mxu0 0.0
  %153 = vmatpush1.msra.mxu0 0.0
  %154 = vmatprep.subr.mxu0 0.0
  %155 = vmatpush1.msra.mxu0 0.0
  %156 = vmatprep.subr.mxu0 0.0
  %157 = vmatpush1.msra.mxu0 0.0
  %158 = vmatprep.subr.mxu0 0.0
  %159 = vmatpush1.msra.mxu0 0.0
  %160 = vmatprep.subr.mxu0 0.0
  %161 = vmatpush1.msra.mxu0 0.0
  %162 = vmatprep.subr.mxu0 0.0
  %163 = vmatpush1.msra.mxu0 0.0
  %164 = vmatprep.subr.mxu0 0.0
  %165 = vmatpush1.msra.mxu0 0.0
  %166 = vmatprep.subr.mxu0 0.0
  %167 = vmatpush1.msra.mxu0 0.0
  %168 = vmatprep.subr.mxu0 0.0
  %169 = vmatpush1.msra.mxu0 0.0
  %170 = vmatprep.subr.mxu0 0.0
  %171 = vmatpush1.msra.mxu0 0.0
  %172 = vmatprep.subr.mxu0 0.0
  %173 = vmatpush1.msra.mxu0 0.0
  %174 = vmatprep.mubr.f32.mxu0 0.0
  %175 = vmatmul.mubr.f32.gmra.mrb[0].mxu0 %v94
  %v176 = vpop.f32.mrb[0].mxu0
  %v177 = vadd.f32 0.0, %v176
  %v178 = vpop.f32.mrb[0].mxu0
  %179 = vmatprep.mubr.f32.mxu0 0.0
  %180 = vmatmul.mubr.f32.gmra.mrb[0].mxu0 %v95
  %v181 = vpop.f32.mrb[0].mxu0
  %v182 = vadd.f32 0.0, %v181
  %v183 = vpop.f32.mrb[0].mxu0
  %184 = vmatprep.mubr.f32.mxu0 0.0
  %185 = vmatmul.mubr.f32.gmra.mrb[0].mxu0 %v96
  %v186 = vpop.f32.mrb[0].mxu0
  %v187 = vadd.f32 0.0, %v186
  %v188 = vpop.f32.mrb[0].mxu0
  %189 = vmatprep.mubr.f32.mxu0 0.0
  %190 = vmatmul.mubr.f32.gmra.mrb[0].mxu0 %v97
  %v191 = vpop.f32.mrb[0].mxu0
  %v192 = vadd.f32 0.0, %v191
  %v193 = vpop.f32.mrb[0].mxu0
  %194 = vmatprep.mubr.f32.mxu0 0.0
  %195 = vmatmul.mubr.f32.gmra.mrb[0].mxu0 %v98
  %v196 = vpop.f32.mrb[0].mxu0
  %v197 = vadd.f32 0.0, %v196
  %v198 = vpop.f32.mrb[0].mxu0
  %199 = vmatprep.mubr.f32.mxu0 0.0
  %200 = vmatmul.mubr.f32.gmra.mrb[0].mxu0 %v99
  %v201 = vpop.f32.mrb[0].mxu0
  %v202 = vadd.f32 0.0, %v201
  %v203 = vpop.f32.mrb[0].mxu0
  %204 = vmatprep.mubr.f32.mxu0 0.0
  %205 = vmatmul.mubr.f32.gmra.mrb[0].mxu0 %v100
  %v206 = vpop.f32.mrb[0].mxu0
  %v207 = vadd.f32 0.0, %v206
  %v208 = vpop.f32.mrb[0].mxu0
  %209 = vmatprep.mubr.f32.mxu0 0.0
  %210 = vmatmul.mubr.f32.gmra.mrb[0].mxu0 %v101
  %v211 = vpop.f32.mrb[0].mxu0
  %v212 = vadd.f32 0.0, %v211
  %v213 = vpop.f32.mrb[0].mxu0
  %214 = vmatprep.mubr.f32.mxu0 0.0
  %215 = vmatmul.mubr.f32.gmra.mrb[0].mxu0 %v102
  %v216 = vpop.f32.mrb[0].mxu0
  %v217 = vadd.f32 0.0, %v216
  %v218 = vpop.f32.mrb[0].mxu0
  %219 = vmatprep.mubr.f32.mxu0 0.0
  %220 = vmatmul.mubr.f32.gmra.mrb[0].mxu0 %v103
  %v221 = vpop.f32.mrb[0].mxu0
  %v222 = vadd.f32 0.0, %v221
  %v223 = vpop.f32.mrb[0].mxu0
  %224 = vmatprep.mubr.f32.mxu0 0.0
  %225 = vmatmul.mubr.f32.gmra.mrb[0].mxu0 %v104
  %v226 = vpop.f32.mrb[0].mxu0
  %v227 = vadd.f32 0.0, %v226
  %v228 = vpop.f32.mrb[0].mxu0
  %229 = vmatprep.mubr.f32.mxu0 0.0
  %230 = vmatmul.mubr.f32.gmra.mrb[0].mxu0 %v105
  %v231 = vpop.f32.mrb[0].mxu0
  %v232 = vadd.f32 0.0, %v231
  %v233 = vpop.f32.mrb[0].mxu0
  %234 = vmatprep.mubr.f32.mxu0 0.0
  %235 = vmatmul.mubr.f32.gmra.mrb[0].mxu0 %v106
  %v236 = vpop.f32.mrb[0].mxu0
  %v237 = vadd.f32 0.0, %v236
  %v238 = vpop.f32.mrb[0].mxu0
  %239 = vmatprep.mubr.f32.mxu0 0.0
  %240 = vmatmul.mubr.f32.gmra.mrb[0].mxu0 %v107
  %v241 = vpop.f32.mrb[0].mxu0
  %v242 = vadd.f32 0.0, %v241
  %v243 = vpop.f32.mrb[0].mxu0
  %244 = vmatprep.mubr.f32.mxu0 0.0
  %245 = vmatmul.mubr.f32.gmra.mrb[0].mxu0 %v108
  %v246 = vpop.f32.mrb[0].mxu0
  %v247 = vadd.f32 0.0, %v246
  %v248 = vpop.f32.mrb[0].mxu0
  %249 = vmatprep.mubr.f32.mxu0 0.0
  %250 = vmatmul.mubr.f32.gmra.mrb[0].mxu0 %v109
  %v251 = vpop.f32.mrb[0].mxu0
  %v252 = vadd.f32 0.0, %v251
  %v253 = vpop.f32.mrb[0].mxu0
  %254 = vdwg.mxu0
  %v255 = vadd.f32 %v58, %v177
  %v256 = vadd.f32 %v59, %v182
  %v257 = vadd.f32 %v60, %v187
  %v258 = vadd.f32 %v61, %v192
  %v259 = vadd.f32 %v62, %v197
  %v260 = vadd.f32 %v63, %v202
  %v261 = vadd.f32 %v64, %v207
  %v262 = vadd.f32 %v65, %v212
  %v263 = vadd.f32 %v66, %v217
  %v264 = vadd.f32 %v67, %v222
  %v265 = vadd.f32 %v68, %v227
  %v266 = vadd.f32 %v69, %v232
  %v267 = vadd.f32 %v70, %v237
  %v268 = vadd.f32 %v71, %v242
  %v269 = vadd.f32 %v72, %v247
  %v270 = vadd.f32 %v73, %v252
  %271 = vst [vmem:[#allocation2] sm:$0xff] %v255
  %272 = vst [vmem:[#allocation2 + $0x8] sm:$0xff] %v256
  %273 = vst [vmem:[#allocation2 + $0x10] sm:$0xff] %v257
  %274 = vst [vmem:[#allocation2 + $0x18] sm:$0xff] %v258
  %275 = vst [vmem:[#allocation2 + $0x20] sm:$0xff] %v259
  %276 = vst [vmem:[#allocation2 + $0x28] sm:$0xff] %v260
  %277 = vst [vmem:[#allocation2 + $0x30] sm:$0xff] %v261
  %278 = vst [vmem:[#allocation2 + $0x38] sm:$0xff] %v262
  %279 = vst [vmem:[#allocation2 + $0x40] sm:$0xff] %v263
  %280 = vst [vmem:[#allocation2 + $0x48] sm:$0xff] %v264
  %281 = vst [vmem:[#allocation2 + $0x50] sm:$0xff] %v265
  %282 = vst [vmem:[#allocation2 + $0x58] sm:$0xff] %v266
  %283 = vst [vmem:[#allocation2 + $0x60] sm:$0xff] %v267
  %284 = vst [vmem:[#allocation2 + $0x68] sm:$0xff] %v268
  %285 = vst [vmem:[#allocation2 + $0x70] sm:$0xff] %v269
  %286 = vst [vmem:[#allocation2 + $0x78] sm:$0xff] %v270
  // Predicated region
  $region26: #{gnn_layer.1} parent=0 // pred_check
    %p287 = pneg %p20
  $region27: #{gnn_layer.1} parent=0 // pred_check_branch
    %289 = sbr.rel (%p287) target = $region29
  $region28: #{gnn_layer.1} parent=0 // pred_region
    %v290 = vld [vmem:[#allocation2] sm:$0xff]
    %v291 = vld [vmem:[#allocation2 + $0x8] sm:$0xff]
    %v292 = vld [vmem:[#allocation2 + $0x10] sm:$0xff]
    %v293 = vld [vmem:[#allocation2 + $0x18] sm:$0xff]
    %v294 = vld [vmem:[#allocation2 + $0x20] sm:$0xff]
    %v295 = vld [vmem:[#allocation2 + $0x28] sm:$0xff]
    %v296 = vld [vmem:[#allocation2 + $0x30] sm:$0xff]
    %v297 = vld [vmem:[#allocation2 + $0x38] sm:$0xff]
    %v298 = vld [vmem:[#allocation2 + $0x40] sm:$0xff]
    %v299 = vld [vmem:[#allocation2 + $0x48] sm:$0xff]
    %v300 = vld [vmem:[#allocation2 + $0x50] sm:$0xff]
    %v301 = vld [vmem:[#allocation2 + $0x58] sm:$0xff]
    %v302 = vld [vmem:[#allocation2 + $0x60] sm:$0xff]
    %v303 = vld [vmem:[#allocation2 + $0x68] sm:$0xff]
    %v304 = vld [vmem:[#allocation2 + $0x70] sm:$0xff]
    %v305 = vld [vmem:[#allocation2 + $0x78] sm:$0xff]
    %v306 = vld [vmem:[%s2] sm:$0x1]
    %v308 = vlaneseq
    %v309 = vshrl.u32 %v308, 7
    %v310 = vsub.s32 0, %v309
    %v311 = vrot.slane %v306, %v310
    %v313 = vadd.f32 %v290, %v311
    %v314 = vadd.f32 %v291, %v311
    %v315 = vadd.f32 %v292, %v311
    %v316 = vadd.f32 %v293, %v311
    %v317 = vadd.f32 %v294, %v311
    %v318 = vadd.f32 %v295, %v311
    %v319 = vadd.f32 %v296, %v311
    %v320 = vadd.f32 %v297, %v311
    %v321 = vadd.f32 %v298, %v311
    %v322 = vadd.f32 %v299, %v311
    %v323 = vadd.f32 %v300, %v311
    %v324 = vadd.f32 %v301, %v311
    %v325 = vadd.f32 %v302, %v311
    %v326 = vadd.f32 %v303, %v311
    %v327 = vadd.f32 %v304, %v311
    %v328 = vadd.f32 %v305, %v311
    %v329 = vld [vmem:[%s3] sm:$0x1]
    %v330 = vld [vmem:[%s4] sm:$0x1]
    %v331 = vmax.f32 %v313, 0.0
    %v332 = vmax.f32 %v314, 0.0
    %v333 = vmax.f32 %v315, 0.0
    %v334 = vmax.f32 %v316, 0.0
    %v335 = vmax.f32 %v317, 0.0
    %v336 = vmax.f32 %v318, 0.0
    %v337 = vmax.f32 %v319, 0.0
    %v338 = vmax.f32 %v320, 0.0
    %v339 = vmax.f32 %v321, 0.0
    %v340 = vmax.f32 %v322, 0.0
    %v341 = vmax.f32 %v323, 0.0
    %v342 = vmax.f32 %v324, 0.0
    %v343 = vmax.f32 %v325, 0.0
    %v344 = vmax.f32 %v326, 0.0
    %v345 = vmax.f32 %v327, 0.0
    %v346 = vmax.f32 %v328, 0.0
    %v347 = vlaneseq
    %v348 = vand.u32 %v347, 127
    %vm349 = vcmp.lt.s32.totalorder %v348, 32
    %350 = vadd.xlane.f32.xlu0 %v331
    %v351 = vpop.xlane.xlu0 %350
    %352 = vadd.xlane.f32.xlu0 %v332
    %v353 = vpop.xlane.xlu0 %352
    %354 = vadd.xlane.f32.xlu0 %v333
    %v355 = vpop.xlane.xlu0 %354
    %356 = vadd.xlane.f32.xlu0 %v334
    %v357 = vpop.xlane.xlu0 %356
    %358 = vadd.xlane.f32.xlu0 %v335
    %v359 = vpop.xlane.xlu0 %358
    %360 = vadd.xlane.f32.xlu0 %v336
    %v361 = vpop.xlane.xlu0 %360
    %362 = vadd.xlane.f32.xlu0 %v337
    %v363 = vpop.xlane.xlu0 %362
    %364 = vadd.xlane.f32.xlu0 %v338
    %v365 = vpop.xlane.xlu0 %364
    %366 = vadd.xlane.f32.xlu0 %v339
    %v367 = vpop.xlane.xlu0 %366
    %368 = vadd.xlane.f32.xlu0 %v340
    %v369 = vpop.xlane.xlu0 %368
    %370 = vadd.xlane.f32.xlu0 %v341
    %v371 = vpop.xlane.xlu0 %370
    %372 = vadd.xlane.f32.xlu0 %v342
    %v373 = vpop.xlane.xlu0 %372
    %374 = vadd.xlane.f32.xlu0 %v343
    %v375 = vpop.xlane.xlu0 %374
    %376 = vadd.xlane.f32.xlu0 %v344
    %v377 = vpop.xlane.xlu0 %376
    %378 = vadd.xlane.f32.xlu0 %v345
    %v379 = vpop.xlane.xlu0 %378
    %380 = vadd.xlane.f32.xlu0 %v346
    %v381 = vpop.xlane.xlu0 %380
    %v382 = vmul.f32 %v351, 0.03125
    %v383 = vmul.f32 %v353, 0.03125
    %v384 = vmul.f32 %v355, 0.03125
    %v385 = vmul.f32 %v357, 0.03125
    %v386 = vmul.f32 %v359, 0.03125
    %v387 = vmul.f32 %v361, 0.03125
    %v388 = vmul.f32 %v363, 0.03125
    %v389 = vmul.f32 %v365, 0.03125
    %v390 = vmul.f32 %v367, 0.03125
    %v391 = vmul.f32 %v369, 0.03125
    %v392 = vmul.f32 %v371, 0.03125
    %v393 = vmul.f32 %v373, 0.03125
    %v394 = vmul.f32 %v375, 0.03125
    %v395 = vmul.f32 %v377, 0.03125
    %v396 = vmul.f32 %v379, 0.03125
    %v397 = vmul.f32 %v381, 0.03125
    %v398 = vsub.f32 %v331, %v382
    %v399 = vsub.f32 %v332, %v383
    %v400 = vsub.f32 %v333, %v384
    %v401 = vsub.f32 %v334, %v385
    %v402 = vsub.f32 %v335, %v386
    %v403 = vsub.f32 %v336, %v387
    %v404 = vsub.f32 %v337, %v388
    %v405 = vsub.f32 %v338, %v389
    %v406 = vsub.f32 %v339, %v390
    %v407 = vsub.f32 %v340, %v391
    %v408 = vsub.f32 %v341, %v392
    %v409 = vsub.f32 %v342, %v393
    %v410 = vsub.f32 %v343, %v394
    %v411 = vsub.f32 %v344, %v395
    %v412 = vsub.f32 %v345, %v396
    %v413 = vsub.f32 %v346, %v397
    %v414 = vsel %vm349, %v398, 0.0
    %v415 = vsel %vm349, %v399, 0.0
    %v416 = vsel %vm349, %v400, 0.0
    %v417 = vsel %vm349, %v401, 0.0
    %v418 = vsel %vm349, %v402, 0.0
    %v419 = vsel %vm349, %v403, 0.0
    %v420 = vsel %vm349, %v404, 0.0
    %v421 = vsel %vm349, %v405, 0.0
    %v422 = vsel %vm349, %v406, 0.0
    %v423 = vsel %vm349, %v407, 0.0
    %v424 = vsel %vm349, %v408, 0.0
    %v425 = vsel %vm349, %v409, 0.0
    %v426 = vsel %vm349, %v410, 0.0
    %v427 = vsel %vm349, %v411, 0.0
    %v428 = vsel %vm349, %v412, 0.0
    %v429 = vsel %vm349, %v413, 0.0
    %v430 = vmul.f32 %v414, %v414
    %v431 = vmul.f32 %v415, %v415
    %v432 = vmul.f32 %v416, %v416
    %v433 = vmul.f32 %v417, %v417
    %v434 = vmul.f32 %v418, %v418
    %v435 = vmul.f32 %v419, %v419
    %v436 = vmul.f32 %v420, %v420
    %v437 = vmul.f32 %v421, %v421
    %v438 = vmul.f32 %v422, %v422
    %v439 = vmul.f32 %v423, %v423
    %v440 = vmul.f32 %v424, %v424
    %v441 = vmul.f32 %v425, %v425
    %v442 = vmul.f32 %v426, %v426
    %v443 = vmul.f32 %v427, %v427
    %v444 = vmul.f32 %v428, %v428
    %v445 = vmul.f32 %v429, %v429
    %446 = vadd.xlane.f32.xlu0 %v430
    %v447 = vpop.xlane.xlu0 %446
    %448 = vadd.xlane.f32.xlu0 %v431
    %v449 = vpop.xlane.xlu0 %448
    %450 = vadd.xlane.f32.xlu0 %v432
    %v451 = vpop.xlane.xlu0 %450
    %452 = vadd.xlane.f32.xlu0 %v433
    %v453 = vpop.xlane.xlu0 %452
    %454 = vadd.xlane.f32.xlu0 %v434
    %v455 = vpop.xlane.xlu0 %454
    %456 = vadd.xlane.f32.xlu0 %v435
    %v457 = vpop.xlane.xlu0 %456
    %458 = vadd.xlane.f32.xlu0 %v436
    %v459 = vpop.xlane.xlu0 %458
    %460 = vadd.xlane.f32.xlu0 %v437
    %v461 = vpop.xlane.xlu0 %460
    %462 = vadd.xlane.f32.xlu0 %v438
    %v463 = vpop.xlane.xlu0 %462
    %464 = vadd.xlane.f32.xlu0 %v439
    %v465 = vpop.xlane.xlu0 %464
    %466 = vadd.xlane.f32.xlu0 %v440
    %v467 = vpop.xlane.xlu0 %466
    %468 = vadd.xlane.f32.xlu0 %v441
    %v469 = vpop.xlane.xlu0 %468
    %470 = vadd.xlane.f32.xlu0 %v442
    %v471 = vpop.xlane.xlu0 %470
    %472 = vadd.xlane.f32.xlu0 %v443
    %v473 = vpop.xlane.xlu0 %472
    %474 = vadd.xlane.f32.xlu0 %v444
    %v475 = vpop.xlane.xlu0 %474
    %476 = vadd.xlane.f32.xlu0 %v445
    %v477 = vpop.xlane.xlu0 %476
    %v478 = vmul.f32 %v447, 0.03125
    %v479 = vmul.f32 %v449, 0.03125
    %v480 = vmul.f32 %v451, 0.03125
    %v481 = vmul.f32 %v453, 0.03125
    %v482 = vmul.f32 %v455, 0.03125
    %v483 = vmul.f32 %v457, 0.03125
    %v484 = vmul.f32 %v459, 0.03125
    %v485 = vmul.f32 %v461, 0.03125
    %v486 = vmul.f32 %v463, 0.03125
    %v487 = vmul.f32 %v465, 0.03125
    %v488 = vmul.f32 %v467, 0.03125
    %v489 = vmul.f32 %v469, 0.03125
    %v490 = vmul.f32 %v471, 0.03125
    %v491 = vmul.f32 %v473, 0.03125
    %v492 = vmul.f32 %v475, 0.03125
    %v493 = vmul.f32 %v477, 0.03125
    %v494 = vadd.f32 %v478, 1e-05
    %v495 = vadd.f32 %v479, 1e-05
    %v496 = vadd.f32 %v480, 1e-05
    %v497 = vadd.f32 %v481, 1e-05
    %v498 = vadd.f32 %v482, 1e-05
    %v499 = vadd.f32 %v483, 1e-05
    %v500 = vadd.f32 %v484, 1e-05
    %v501 = vadd.f32 %v485, 1e-05
    %v502 = vadd.f32 %v486, 1e-05
    %v503 = vadd.f32 %v487, 1e-05
    %v504 = vadd.f32 %v488, 1e-05
    %v505 = vadd.f32 %v489, 1e-05
    %v506 = vadd.f32 %v490, 1e-05
    %v507 = vadd.f32 %v491, 1e-05
    %v508 = vadd.f32 %v492, 1e-05
    %v509 = vadd.f32 %v493, 1e-05
    %v510 = vrsqrt.pop %v494
    %v511 = vrsqrt.pop %v495
    %v512 = vrsqrt.pop %v496
    %v513 = vrsqrt.pop %v497
    %v514 = vrsqrt.pop %v498
    %v515 = vrsqrt.pop %v499
    %v516 = vrsqrt.pop %v500
    %v517 = vrsqrt.pop %v501
    %v518 = vrsqrt.pop %v502
    %v519 = vrsqrt.pop %v503
    %v520 = vrsqrt.pop %v504
    %v521 = vrsqrt.pop %v505
    %v522 = vrsqrt.pop %v506
    %v523 = vrsqrt.pop %v507
    %v524 = vrsqrt.pop %v508
    %v525 = vrsqrt.pop %v509
    %v526 = vmul.f32 %v414, %v510
    %v527 = vmul.f32 %v415, %v511
    %v528 = vmul.f32 %v416, %v512
    %v529 = vmul.f32 %v417, %v513
    %v530 = vmul.f32 %v418, %v514
    %v531 = vmul.f32 %v419, %v515
    %v532 = vmul.f32 %v420, %v516
    %v533 = vmul.f32 %v421, %v517
    %v534 = vmul.f32 %v422, %v518
    %v535 = vmul.f32 %v423, %v519
    %v536 = vmul.f32 %v424, %v520
    %v537 = vmul.f32 %v425, %v521
    %v538 = vmul.f32 %v426, %v522
    %v539 = vmul.f32 %v427, %v523
    %v540 = vmul.f32 %v428, %v524
    %v541 = vmul.f32 %v429, %v525
    %v543 = vlaneseq
    %v544 = vshrl.u32 %v543, 7
    %v545 = vsub.s32 0, %v544
    %v546 = vrot.slane %v329, %v545
    %v548 = vmul.f32 %v526, %v546
    %v549 = vmul.f32 %v527, %v546
    %v550 = vmul.f32 %v528, %v546
    %v551 = vmul.f32 %v529, %v546
    %v552 = vmul.f32 %v530, %v546
    %v553 = vmul.f32 %v531, %v546
    %v554 = vmul.f32 %v532, %v546
    %v555 = vmul.f32 %v533, %v546
    %v556 = vmul.f32 %v534, %v546
    %v557 = vmul.f32 %v535, %v546
    %v558 = vmul.f32 %v536, %v546
    %v559 = vmul.f32 %v537, %v546
    %v560 = vmul.f32 %v538, %v546
    %v561 = vmul.f32 %v539, %v546
    %v562 = vmul.f32 %v540, %v546
    %v563 = vmul.f32 %v541, %v546
    %v565 = vlaneseq
    %v566 = vshrl.u32 %v565, 7
    %v567 = vsub.s32 0, %v566
    %v568 = vrot.slane %v330, %v567
    %v570 = vadd.f32 %v548, %v568
    %v571 = vadd.f32 %v549, %v568
    %v572 = vadd.f32 %v550, %v568
    %v573 = vadd.f32 %v551, %v568
    %v574 = vadd.f32 %v552, %v568
    %v575 = vadd.f32 %v553, %v568
    %v576 = vadd.f32 %v554, %v568
    %v577 = vadd.f32 %v555, %v568
    %v578 = vadd.f32 %v556, %v568
    %v579 = vadd.f32 %v557, %v568
    %v580 = vadd.f32 %v558, %v568
    %v581 = vadd.f32 %v559, %v568
    %v582 = vadd.f32 %v560, %v568
    %v583 = vadd.f32 %v561, %v568
    %v584 = vadd.f32 %v562, %v568
    %v585 = vadd.f32 %v563, %v568
    %586 = vst [vmem:[%s5] sm:$0xff] %v570
    %587 = vst [vmem:[%s5 + $0x8] sm:$0xff] %v571
    %588 = vst [vmem:[%s5 + $0x10] sm:$0xff] %v572
    %589 = vst [vmem:[%s5 + $0x18] sm:$0xff] %v573
    %590 = vst [vmem:[%s5 + $0x20] sm:$0xff] %v574
    %591 = vst [vmem:[%s5 + $0x28] sm:$0xff] %v575
    %592 = vst [vmem:[%s5 + $0x30] sm:$0xff] %v576
    %593 = vst [vmem:[%s5 + $0x38] sm:$0xff] %v577
    %594 = vst [vmem:[%s5 + $0x40] sm:$0xff] %v578
    %595 = vst [vmem:[%s5 + $0x48] sm:$0xff] %v579
    %596 = vst [vmem:[%s5 + $0x50] sm:$0xff] %v580
    %597 = vst [vmem:[%s5 + $0x58] sm:$0xff] %v581
    %598 = vst [vmem:[%s5 + $0x60] sm:$0xff] %v582
    %599 = vst [vmem:[%s5 + $0x68] sm:$0xff] %v583
    %600 = vst [vmem:[%s5 + $0x70] sm:$0xff] %v584
    %601 = vst [vmem:[%s5 + $0x78] sm:$0xff] %v585
  $region29: #{gnn_layer.1} parent=0 // pred_fallthru
    _
  // Predicated region
  $region30: #{gnn_layer.1} parent=0 // pred_check
    _
  $region31: #{gnn_layer.1} parent=0 // pred_check_branch
    %603 = sbr.rel (0) target = $region33
  $region32: #{gnn_layer.1} parent=0 // pred_region
    _
  $region33: #{gnn_layer.1} parent=0 // pred_fallthru
    _
  // Predicated region
  $region34: #{gnn_layer.1} parent=0 // pred_check
    _
  $region35: #{gnn_layer.1} parent=0 // pred_check_branch
    %605 = sbr.rel (0) target = $region37
  $region36: #{gnn_layer.1} parent=0 // pred_region
    _
  $region37: #{gnn_layer.1} parent=0 // pred_fallthru
    _

</llo_original>
